<compile_context>
chip_gen: v7x
topology: tpu7x:2x2x1
jax: 0.10.0
libtpu: 0.0.40
codegen_flags: <defaults>
</compile_context>

<pallas_src>
import math
from functools import partial

import jax
import jax.numpy as jnp
from jax.experimental import pallas as pl
from jax.experimental.pallas import tpu as pltpu


def attention_pool_kernel(x_ref, pos0_ref, posx_ref, wq_ref, bq_ref,
                          wkv_ref, bkv_ref, cw_ref, cb_ref, hmap_ref, hexp_ref,
                          o_ref, *, num_heads):
    # x_ref:    (Bb, HW, C)   spatial tokens, channels on lanes (matmul dtype)
    # pos0_ref: (1, C)  f32   positional embedding of the pooled token
    # posx_ref: (HW, C)       positional embedding of the spatial tokens
    # wq_ref:   (C, C)        query projection (pooled token only)
    # bq_ref:   (1, C)  f32
    # wkv_ref:  (C, 2C)       key/value projection (all tokens)
    # bkv_ref:  (1, 2C) f32
    # cw_ref:   (C, Dout)     output projection
    # cb_ref:   (1, Dout) f32
    # hmap_ref: (C, nH) f32   one-hot channel -> head membership
    # hexp_ref: (nH, C) f32   head -> channel broadcast
    # o_ref:    (Bb, Dout)    pooled output for this batch block
    f32 = jnp.float32
    x = x_ref[...]
    Bb, HW, C = x.shape
    nH = num_heads
    ch = C // nH
    md = wkv_ref.dtype
    scale = 1.0 / math.sqrt(ch)   # == (1/sqrt(sqrt(ch)))**2 applied to q*k product

    # Pooled token 0 = mean over spatial tokens + pos[0]  (kept f32, no concat:
    # the main path stays at the 8-aligned HW token count).
    tok0 = jnp.mean(x.astype(f32), axis=1) + pos0_ref[...]              # (Bb, C)

    # Spatial tokens + positional embedding.
    xs = x + posx_ref[...][None, :, :]                                  # (Bb, HW, C)

    # K/V for all spatial tokens: ONE fat MXU matmul, M = Bb*HW, K = C, N = 2C
    # (weights are NOT broadcast per batch element).  HW is a multiple of 8, so
    # the leading-dim collapse is layout-preserving.
    xs2 = xs.reshape(Bb * HW, C)
    kv2 = jnp.dot(xs2, wkv_ref[...], preferred_element_type=f32) + bkv_ref[...]
    kv = kv2.reshape(Bb, HW, 2 * C)                                     # (Bb, HW, 2C) f32
    k = kv[:, :, :C]
    v = kv[:, :, C:]

    # Pooled-token projections: only its query row is ever consumed (row-0-only
    # attention); its K/V row participates as one extra key/value.
    tok0_m = tok0.astype(md)
    q0 = jnp.dot(tok0_m, wq_ref[...], preferred_element_type=f32) + bq_ref[...]     # (Bb, C)
    kv0 = jnp.dot(tok0_m, wkv_ref[...], preferred_element_type=f32) + bkv_ref[...]  # (Bb, 2C)
    k0 = kv0[:, :C]
    v0 = kv0[:, C:]

    # Per-head scores for the single query row via a one-hot segment-sum matmul:
    #   s[b, t, h] = (1/sqrt(ch)) * sum_{c in head h} q0[b, c] * k[b, t, c]
    prod = (q0[:, None, :] * k) * scale                                 # (Bb, HW, C) f32
    s = jnp.dot(prod.reshape(Bb * HW, C), hmap_ref[...],
                preferred_element_type=f32).reshape(Bb, HW, nH)         # (Bb, HW, nH)
    s0 = jnp.dot((q0 * k0) * scale, hmap_ref[...],
                 preferred_element_type=f32)                            # (Bb, nH)

    # Softmax over the HW + 1 keys (pooled token folded in explicitly).
    m = jnp.maximum(jnp.max(s, axis=1), s0)                             # (Bb, nH)
    p = jnp.exp(s - m[:, None, :])                                      # (Bb, HW, nH)
    p0 = jnp.exp(s0 - m)                                                # (Bb, nH)
    inv = pl.reciprocal(jnp.sum(p, axis=1) + p0, approx=True)           # EUP slot
    w = p * inv[:, None, :]                                             # (Bb, HW, nH)
    w0 = p0 * inv                                                       # (Bb, nH)

    # Weighted value sum: broadcast per-head weights back onto channel lanes,
    # reduce over tokens:  a[b, c] = sum_t w[b, t, head(c)] * v[b, t, c]
    wfull = jnp.dot(w.reshape(Bb * HW, nH), hexp_ref[...],
                    preferred_element_type=f32).reshape(Bb, HW, C)      # (Bb, HW, C)
    a = jnp.sum(wfull * v, axis=1)                                      # (Bb, C)
    a = a + jnp.dot(w0, hexp_ref[...], preferred_element_type=f32) * v0

    # c_proj on the pooled token only; single lane-dense (Bb, Dout) store.
    out = jnp.dot(a.astype(md), cw_ref[...], preferred_element_type=f32) + cb_ref[...]
    o_ref[...] = out.astype(o_ref.dtype)


def _vmem_capacity_bytes(default=64 * 1024 * 1024):
    try:
        return int(getattr(pltpu.get_tpu_info(), "vmem_capacity_bytes", default))
    except Exception:
        return default


def _pick_block_b(B, HW, C, Dout, num_heads, itemsize, vmem_budget_bytes=None):
    """Pick the batch block size.

    Largest divisor of B that (a) fits a generation-aware VMEM budget
    (double-buffered x block + resident weights + f32 kv/prod/w_full temps),
    (b) keeps >= 4 grid steps when the batch allows (megacore sharding on v7x,
    DMA/compute overlap), and (c) is a multiple of 8 (sublane-full output
    stores) or covers the whole batch.
    """
    if vmem_budget_bytes is None:
        # ~45% of physical VMEM (v5e/v6e: 128 MiB, v7x: 64 MiB) leaves headroom
        # for the pipeline's weight double-buffers and compiler scratch.
        vmem_budget_bytes = int(_vmem_capacity_bytes() * 0.45)
    T = HW + 1
    # resident, double-buffered weights / positional tables / biases (+ slack)
    fixed = (2 * itemsize * (3 * C * C + C * Dout + T * C)
             + 2 * 4 * (2 * C * num_heads + 3 * C + 2 * Dout) + (64 << 10))
    # per batch element: 2x-buffered x block, xs, f32 kv + prod + w_full temps, out
    per_b = HW * C * (3 * itemsize + 5 * 4) + 8 * (C + Dout)
    cap_b = max(1, (vmem_budget_bytes - fixed) // per_b)
    cands = [d for d in range(1, B + 1) if B % d == 0 and (d % 8 == 0 or d == B)]
    fit = [d for d in cands if d <= cap_b] or [min(cands)]
    multi_step = [d for d in fit if B // d >= 4]
    return max(multi_step or fit)


def attention_pool2d(x, pos_emb, qkv_w, qkv_b, c_w, c_b, num_heads,
                     block_b=None, matmul_dtype=jnp.bfloat16, channels_last=False,
                     vmem_budget_bytes=None):
    """AttentionPool2d forward.  x: (B, C, H, W) NCHW (PyTorch convention) or
    (B, H, W, C) / (B, HW, C) when channels_last=True.  Returns (B, output_dim)."""
    orig_dtype = x.dtype
    if channels_last:
        B, C = x.shape[0], x.shape[-1]
        HW = math.prod(x.shape[1:-1])
        x_tok = x.reshape(B, HW, C)                      # already token-major, no transpose
    else:
        B, C = x.shape[0], x.shape[1]
        HW = math.prod(x.shape[2:])
        # TODO(synk): at production scale, fuse this NCHW->token-major relayout into the
        # producer of x (or pass channels_last=True) to avoid an extra HBM round trip.
        x_tok = jnp.transpose(x.reshape(B, C, HW), (0, 2, 1))   # (B, HW, C)
    T = HW + 1
    Dout = c_w.shape[0]
    nH = num_heads
    ch = C // nH
    assert C % nH == 0 and pos_emb.shape == (C, T)

    md = matmul_dtype if matmul_dtype is not None else x_tok.dtype

    # Parameter prep (tiny, done once outside the kernel).
    qkv_w2 = qkv_w.reshape(3 * C, C)
    w_q = qkv_w2[:C].T.astype(md)                        # (C, C)   pooled-token query only
    w_kv = qkv_w2[C:].T.astype(md)                       # (C, 2C)  keys/values, all tokens
    b_q = qkv_b[:C].reshape(1, C).astype(jnp.float32)
    b_kv = qkv_b[C:].reshape(1, 2 * C).astype(jnp.float32)
    c_w_t = c_w.reshape(Dout, C).T.astype(md)            # (C, Dout)
    c_b2 = c_b.reshape(1, Dout).astype(jnp.float32)
    pos_t = pos_emb.T                                    # (T, C)
    pos0 = pos_t[0:1].astype(jnp.float32)                # (1, C)  added to the f32 mean token
    pos_x = pos_t[1:].astype(md)                         # (HW, C) added to spatial tokens

    # One-hot head membership: per-head segment-sum / broadcast as small MXU matmuls.
    head_ids = jnp.arange(C) // ch
    hmap = (head_ids[:, None] == jnp.arange(nH)[None, :]).astype(jnp.float32)   # (C, nH)
    hexp = hmap.T                                                               # (nH, C)

    x_tok = x_tok.astype(md)                             # bf16 halves the x-block DMA bytes
    itemsize = jnp.dtype(md).itemsize

    if block_b is None:
        block_b = _pick_block_b(B, HW, C, Dout, nH, itemsize, vmem_budget_bytes)
    n_steps = -(-B // block_b)
    Bp = n_steps * block_b
    assert block_b % 8 == 0 or block_b == Bp, (
        "block_b must be a multiple of 8 (sublane tile) or cover the whole batch")
    if Bp != B:   # only when a user-supplied block_b does not divide B
        x_tok = jnp.pad(x_tok, ((0, Bp - B), (0, 0), (0, 0)))

    vmem_limit = int(_vmem_capacity_bytes() * 0.75)

    out = pl.pallas_call(
        partial(attention_pool_kernel, num_heads=nH),
        out_shape=jax.ShapeDtypeStruct((Bp, Dout), orig_dtype),
        grid=(n_steps,),
        in_specs=[
            pl.BlockSpec((block_b, HW, C), lambda i: (i, 0, 0)),   # x block
            pl.BlockSpec((1, C), lambda i: (0, 0)),                # pos0
            pl.BlockSpec((HW, C), lambda i: (0, 0)),               # pos_x
            pl.BlockSpec((C, C), lambda i: (0, 0)),                # w_q
            pl.BlockSpec((1, C), lambda i: (0, 0)),                # b_q
            pl.BlockSpec((C, 2 * C), lambda i: (0, 0)),            # w_kv
            pl.BlockSpec((1, 2 * C), lambda i: (0, 0)),            # b_kv
            pl.BlockSpec((C, Dout), lambda i: (0, 0)),             # c_proj weight
            pl.BlockSpec((1, Dout), lambda i: (0, 0)),             # c_proj bias
            pl.BlockSpec((C, nH), lambda i: (0, 0)),               # hmap
            pl.BlockSpec((nH, C), lambda i: (0, 0)),               # hexp
        ],
        out_specs=pl.BlockSpec((block_b, Dout), lambda i: (i, 0)),
        compiler_params=pltpu.CompilerParams(
            dimension_semantics=("parallel",),
            vmem_limit_bytes=vmem_limit),
    )(x_tok, pos0, pos_x, w_q, b_q, w_kv, b_kv, c_w_t, c_b2, hmap, hexp)
    return out[:B] if Bp != B else out


def reference(x, pos_emb, qkv_w, qkv_b, c_w, c_b, num_heads):
    """Pure-JAX mirror of the PyTorch forward (for correctness checking)."""
    B, C, H, W = x.shape
    xr = x.reshape(B, C, -1)
    xr = jnp.concatenate([xr.mean(axis=-1, keepdims=True), xr], axis=-1)
    xr = xr + pos_emb[None]
    qkv = jnp.einsum('oc,bct->bot', qkv_w.reshape(3 * C, C), xr) + qkv_b[None, :, None]
    q, k, v = jnp.split(qkv, 3, axis=1)
    nH = num_heads
    ch = C // nH
    T = xr.shape[-1]
    qh = q.reshape(B * nH, ch, T)
    kh = k.reshape(B * nH, ch, T)
    vh = v.reshape(B * nH, ch, T)
    scale = 1.0 / math.sqrt(math.sqrt(ch))
    w = jnp.einsum('bct,bcs->bts', qh * scale, kh * scale)
    w = jax.nn.softmax(w, axis=-1)
    a = jnp.einsum('bts,bcs->bct', w, vh).reshape(B, C, T)
    Dout = c_w.shape[0]
    out = jnp.einsum('oc,bct->bot', c_w.reshape(Dout, C), a) + c_b[None, :, None]
    return out[:, :, 0]


if __name__ == "__main__":
    # Module config: spacial_dim=4, embed_dim=32, num_heads_channels=8, output_dim=32
    B = 2
    C = 32                       # embed_dim
    H = 4                        # spacial_dim (H == W)
    num_heads_channels = 8
    num_heads = C // num_heads_channels
    Dout = 32                    # output_dim
    T = H * H + 1

    key = jax.random.PRNGKey(0)
    ks = jax.random.split(key, 6)
    x = jax.random.normal(ks[0], (B, C, H, H), jnp.float32)
    # deterministic synthetic parameters (shapes match the PyTorch module)
    pos_emb = jax.random.normal(ks[1], (C, T), jnp.float32) / math.sqrt(C)
    qkv_w = jax.random.normal(ks[2], (3 * C, C, 1), jnp.float32) * 0.05   # Conv1d(k=1) weight
    qkv_b = jax.random.normal(ks[3], (3 * C,), jnp.float32) * 0.05
    c_w = jax.random.normal(ks[4], (Dout, C, 1), jnp.float32) * 0.05      # Conv1d(k=1) weight
    c_b = jax.random.normal(ks[5], (Dout,), jnp.float32) * 0.05

    ref = reference(x, pos_emb, qkv_w, qkv_b, c_w, c_b, num_heads)

    # f32 MXU path (tight tolerance; approx EUP reciprocal is the only approximation)
    out_f32 = attention_pool2d(x, pos_emb, qkv_w, qkv_b, c_w, c_b, num_heads,
                               matmul_dtype=None)
    out_f32 = jax.block_until_ready(out_f32)
    assert out_f32.shape == (B, Dout), out_f32.shape
    assert jnp.allclose(out_f32, ref, atol=2e-3, rtol=2e-3), \
        float(jnp.max(jnp.abs(out_f32 - ref)))

    # default bf16 MXU path (f32 accumulation) — looser tolerance
    out_bf16 = attention_pool2d(x, pos_emb, qkv_w, qkv_b, c_w, c_b, num_heads)
    out_bf16 = jax.block_until_ready(out_bf16)
    assert out_bf16.shape == (B, Dout), out_bf16.shape
    assert jnp.allclose(out_bf16, ref, atol=2e-2, rtol=2e-2), \
        float(jnp.max(jnp.abs(out_bf16 - ref)))

    print("KERNEL_OK")
</pallas_src>

<mosaic_0001>
module attributes {stable_mosaic.version = 11 : i64} {
  func.func @attention_pool_kernel(%arg0: i32, %arg1: memref<2x16x32xf32, #tpu.memory_space<vmem>>, %arg2: memref<1x32xf32, #tpu.memory_space<vmem>>, %arg3: memref<16x32xf32, #tpu.memory_space<vmem>>, %arg4: memref<32x32xf32, #tpu.memory_space<vmem>>, %arg5: memref<1x32xf32, #tpu.memory_space<vmem>>, %arg6: memref<32x64xf32, #tpu.memory_space<vmem>>, %arg7: memref<1x64xf32, #tpu.memory_space<vmem>>, %arg8: memref<32x32xf32, #tpu.memory_space<vmem>>, %arg9: memref<1x32xf32, #tpu.memory_space<vmem>>, %arg10: memref<32x4xf32, #tpu.memory_space<vmem>>, %arg11: memref<4x32xf32, #tpu.memory_space<vmem>>, %arg12: memref<2x32xf32, #tpu.memory_space<vmem>>) attributes {dimension_semantics = [#tpu.dimension_semantics<parallel>], iteration_bounds = array<i64: 1>, scalar_prefetch = 0 : i64, scratch_operands = 0 : i64, tpu.core_type = #tpu.core_type<tc>, window_params = [{transform_indices = @transform_0, window_bounds = array<i64: 2, 16, 32>}, {pipeline_mode = #tpu.pipeline_mode<synchronous>, transform_indices = @transform_1, window_bounds = array<i64: 1, 32>}, {pipeline_mode = #tpu.pipeline_mode<synchronous>, transform_indices = @transform_2, window_bounds = array<i64: 16, 32>}, {pipeline_mode = #tpu.pipeline_mode<synchronous>, transform_indices = @transform_3, window_bounds = array<i64: 32, 32>}, {pipeline_mode = #tpu.pipeline_mode<synchronous>, transform_indices = @transform_4, window_bounds = array<i64: 1, 32>}, {pipeline_mode = #tpu.pipeline_mode<synchronous>, transform_indices = @transform_5, window_bounds = array<i64: 32, 64>}, {pipeline_mode = #tpu.pipeline_mode<synchronous>, transform_indices = @transform_6, window_bounds = array<i64: 1, 64>}, {pipeline_mode = #tpu.pipeline_mode<synchronous>, transform_indices = @transform_7, window_bounds = array<i64: 32, 32>}, {pipeline_mode = #tpu.pipeline_mode<synchronous>, transform_indices = @transform_8, window_bounds = array<i64: 1, 32>}, {pipeline_mode = #tpu.pipeline_mode<synchronous>, transform_indices = @transform_9, window_bounds = array<i64: 32, 4>}, {pipeline_mode = #tpu.pipeline_mode<synchronous>, transform_indices = @transform_10, window_bounds = array<i64: 4, 32>}, {transform_indices = @transform_11, window_bounds = array<i64: 2, 32>}]} {
    %c0 = arith.constant 0 : index
    %c0_0 = arith.constant 0 : index
    %c0_1 = arith.constant 0 : index
    %0 = vector.load %arg1[%c0, %c0_0, %c0_1] : memref<2x16x32xf32, #tpu.memory_space<vmem>>, vector<2x16x32xf32>
    %cst = arith.constant dense<0.000000e+00> : vector<2x32xf32>
    %1 = vector.multi_reduction <add>, %0, %cst [1] : vector<2x16x32xf32> to vector<2x32xf32>
    %cst_2 = arith.constant 1.600000e+01 : f32
    %2 = vector.broadcast %cst_2 : f32 to vector<2x32xf32>
    %3 = arith.divf %1, %2 : vector<2x32xf32>
    %c0_3 = arith.constant 0 : index
    %c0_4 = arith.constant 0 : index
    %4 = vector.load %arg2[%c0_3, %c0_4] : memref<1x32xf32, #tpu.memory_space<vmem>>, vector<1x32xf32>
    %5 = vector.broadcast %4 : vector<1x32xf32> to vector<2x32xf32>
    %6 = arith.addf %3, %5 : vector<2x32xf32>
    %c0_5 = arith.constant 0 : index
    %c0_6 = arith.constant 0 : index
    %7 = vector.load %arg3[%c0_5, %c0_6] : memref<16x32xf32, #tpu.memory_space<vmem>>, vector<16x32xf32>
    %8 = vector.shape_cast %7 : vector<16x32xf32> to vector<1x16x32xf32>
    %9 = vector.broadcast %8 : vector<1x16x32xf32> to vector<2x16x32xf32>
    %10 = arith.addf %0, %9 : vector<2x16x32xf32>
    %11 = vector.shape_cast %10 : vector<2x16x32xf32> to vector<32x32xf32>
    %c0_7 = arith.constant 0 : index
    %c0_8 = arith.constant 0 : index
    %12 = vector.load %arg6[%c0_7, %c0_8] : memref<32x64xf32, #tpu.memory_space<vmem>>, vector<32x64xf32>
    %cst_9 = arith.constant dense<0.000000e+00> : vector<32x64xf32>
    %13 = tpu.matmul %11, %12, %cst_9 {dimension_numbers = #tpu.dot_dimension_numbers<[1], [0], [0], [1], [0, 0, 1, 1], [], []>} : vector<32x32xf32>, vector<32x64xf32>, vector<32x64xf32> -> vector<32x64xf32>
    %c0_10 = arith.constant 0 : index
    %c0_11 = arith.constant 0 : index
    %14 = vector.load %arg7[%c0_10, %c0_11] : memref<1x64xf32, #tpu.memory_space<vmem>>, vector<1x64xf32>
    %15 = vector.broadcast %14 : vector<1x64xf32> to vector<32x64xf32>
    %16 = arith.addf %13, %15 : vector<32x64xf32>
    %17 = vector.shape_cast %16 : vector<32x64xf32> to vector<2x16x64xf32>
    %18 = vector.extract_strided_slice %17 {offsets = [0, 0, 0], sizes = [2, 16, 32], strides = [1, 1, 1]} : vector<2x16x64xf32> to vector<2x16x32xf32>
    %19 = vector.extract_strided_slice %17 {offsets = [0, 0, 32], sizes = [2, 16, 32], strides = [1, 1, 1]} : vector<2x16x64xf32> to vector<2x16x32xf32>
    %c0_12 = arith.constant 0 : index
    %c0_13 = arith.constant 0 : index
    %20 = vector.load %arg4[%c0_12, %c0_13] : memref<32x32xf32, #tpu.memory_space<vmem>>, vector<32x32xf32>
    %cst_14 = arith.constant dense<0.000000e+00> : vector<2x32xf32>
    %21 = tpu.matmul %6, %20, %cst_14 {dimension_numbers = #tpu.dot_dimension_numbers<[1], [0], [0], [1], [0, 0, 1, 1], [], []>} : vector<2x32xf32>, vector<32x32xf32>, vector<2x32xf32> -> vector<2x32xf32>
    %c0_15 = arith.constant 0 : index
    %c0_16 = arith.constant 0 : index
    %22 = vector.load %arg5[%c0_15, %c0_16] : memref<1x32xf32, #tpu.memory_space<vmem>>, vector<1x32xf32>
    %23 = vector.broadcast %22 : vector<1x32xf32> to vector<2x32xf32>
    %24 = arith.addf %21, %23 : vector<2x32xf32>
    %c0_17 = arith.constant 0 : index
    %c0_18 = arith.constant 0 : index
    %25 = vector.load %arg6[%c0_17, %c0_18] : memref<32x64xf32, #tpu.memory_space<vmem>>, vector<32x64xf32>
    %cst_19 = arith.constant dense<0.000000e+00> : vector<2x64xf32>
    %26 = tpu.matmul %6, %25, %cst_19 {dimension_numbers = #tpu.dot_dimension_numbers<[1], [0], [0], [1], [0, 0, 1, 1], [], []>} : vector<2x32xf32>, vector<32x64xf32>, vector<2x64xf32> -> vector<2x64xf32>
    %c0_20 = arith.constant 0 : index
    %c0_21 = arith.constant 0 : index
    %27 = vector.load %arg7[%c0_20, %c0_21] : memref<1x64xf32, #tpu.memory_space<vmem>>, vector<1x64xf32>
    %28 = vector.broadcast %27 : vector<1x64xf32> to vector<2x64xf32>
    %29 = arith.addf %26, %28 : vector<2x64xf32>
    %30 = vector.extract_strided_slice %29 {offsets = [0, 0], sizes = [2, 32], strides = [1, 1]} : vector<2x64xf32> to vector<2x32xf32>
    %31 = vector.extract_strided_slice %29 {offsets = [0, 32], sizes = [2, 32], strides = [1, 1]} : vector<2x64xf32> to vector<2x32xf32>
    %32 = vector.shape_cast %24 : vector<2x32xf32> to vector<2x1x32xf32>
    %33 = vector.broadcast %32 : vector<2x1x32xf32> to vector<2x16x32xf32>
    %34 = arith.mulf %33, %18 : vector<2x16x32xf32>
    %cst_22 = arith.constant 0.353553385 : f32
    %35 = vector.broadcast %cst_22 : f32 to vector<2x16x32xf32>
    %36 = arith.mulf %34, %35 : vector<2x16x32xf32>
    %37 = vector.shape_cast %36 : vector<2x16x32xf32> to vector<32x32xf32>
    %c0_23 = arith.constant 0 : index
    %c0_24 = arith.constant 0 : index
    %38 = vector.load %arg10[%c0_23, %c0_24] : memref<32x4xf32, #tpu.memory_space<vmem>>, vector<32x4xf32>
    %cst_25 = arith.constant dense<0.000000e+00> : vector<32x4xf32>
    %39 = tpu.matmul %37, %38, %cst_25 {dimension_numbers = #tpu.dot_dimension_numbers<[1], [0], [0], [1], [0, 0, 1, 1], [], []>} : vector<32x32xf32>, vector<32x4xf32>, vector<32x4xf32> -> vector<32x4xf32>
    %40 = vector.shape_cast %39 : vector<32x4xf32> to vector<2x16x4xf32>
    %41 = arith.mulf %24, %30 : vector<2x32xf32>
    %cst_26 = arith.constant 0.353553385 : f32
    %42 = vector.broadcast %cst_26 : f32 to vector<2x32xf32>
    %43 = arith.mulf %41, %42 : vector<2x32xf32>
    %c0_27 = arith.constant 0 : index
    %c0_28 = arith.constant 0 : index
    %44 = vector.load %arg10[%c0_27, %c0_28] : memref<32x4xf32, #tpu.memory_space<vmem>>, vector<32x4xf32>
    %cst_29 = arith.constant dense<0.000000e+00> : vector<2x4xf32>
    %45 = tpu.matmul %43, %44, %cst_29 {dimension_numbers = #tpu.dot_dimension_numbers<[1], [0], [0], [1], [0, 0, 1, 1], [], []>} : vector<2x32xf32>, vector<32x4xf32>, vector<2x4xf32> -> vector<2x4xf32>
    %cst_30 = arith.constant dense<0xFF800000> : vector<2x4xf32>
    %46 = vector.multi_reduction <maximumf>, %40, %cst_30 [1] : vector<2x16x4xf32> to vector<2x4xf32>
    %47 = arith.maximumf %46, %45 : vector<2x4xf32>
    %48 = vector.shape_cast %47 : vector<2x4xf32> to vector<2x1x4xf32>
    %49 = vector.broadcast %48 : vector<2x1x4xf32> to vector<2x16x4xf32>
    %50 = arith.subf %40, %49 : vector<2x16x4xf32>
    %51 = math.exp %50 : vector<2x16x4xf32>
    %52 = arith.subf %45, %47 : vector<2x4xf32>
    %53 = math.exp %52 : vector<2x4xf32>
    %cst_31 = arith.constant dense<0.000000e+00> : vector<2x4xf32>
    %54 = vector.multi_reduction <add>, %51, %cst_31 [1] : vector<2x16x4xf32> to vector<2x4xf32>
    %55 = arith.addf %54, %53 : vector<2x4xf32>
    %56 = tpu.reciprocal %55 {approx = true} : vector<2x4xf32> -> vector<2x4xf32>
    %57 = vector.shape_cast %56 : vector<2x4xf32> to vector<2x1x4xf32>
    %58 = vector.broadcast %57 : vector<2x1x4xf32> to vector<2x16x4xf32>
    %59 = arith.mulf %51, %58 : vector<2x16x4xf32>
    %60 = arith.mulf %53, %56 : vector<2x4xf32>
    %61 = vector.shape_cast %59 : vector<2x16x4xf32> to vector<32x4xf32>
    %c0_32 = arith.constant 0 : index
    %c0_33 = arith.constant 0 : index
    %62 = vector.load %arg11[%c0_32, %c0_33] : memref<4x32xf32, #tpu.memory_space<vmem>>, vector<4x32xf32>
    %cst_34 = arith.constant dense<0.000000e+00> : vector<32x32xf32>
    %63 = tpu.matmul %61, %62, %cst_34 {dimension_numbers = #tpu.dot_dimension_numbers<[1], [0], [0], [1], [0, 0, 1, 1], [], []>} : vector<32x4xf32>, vector<4x32xf32>, vector<32x32xf32> -> vector<32x32xf32>
    %64 = vector.shape_cast %63 : vector<32x32xf32> to vector<2x16x32xf32>
    %65 = arith.mulf %64, %19 : vector<2x16x32xf32>
    %cst_35 = arith.constant dense<0.000000e+00> : vector<2x32xf32>
    %66 = vector.multi_reduction <add>, %65, %cst_35 [1] : vector<2x16x32xf32> to vector<2x32xf32>
    %c0_36 = arith.constant 0 : index
    %c0_37 = arith.constant 0 : index
    %67 = vector.load %arg11[%c0_36, %c0_37] : memref<4x32xf32, #tpu.memory_space<vmem>>, vector<4x32xf32>
    %cst_38 = arith.constant dense<0.000000e+00> : vector<2x32xf32>
    %68 = tpu.matmul %60, %67, %cst_38 {dimension_numbers = #tpu.dot_dimension_numbers<[1], [0], [0], [1], [0, 0, 1, 1], [], []>} : vector<2x4xf32>, vector<4x32xf32>, vector<2x32xf32> -> vector<2x32xf32>
    %69 = arith.mulf %68, %31 : vector<2x32xf32>
    %70 = arith.addf %66, %69 : vector<2x32xf32>
    %c0_39 = arith.constant 0 : index
    %c0_40 = arith.constant 0 : index
    %71 = vector.load %arg8[%c0_39, %c0_40] : memref<32x32xf32, #tpu.memory_space<vmem>>, vector<32x32xf32>
    %cst_41 = arith.constant dense<0.000000e+00> : vector<2x32xf32>
    %72 = tpu.matmul %70, %71, %cst_41 {dimension_numbers = #tpu.dot_dimension_numbers<[1], [0], [0], [1], [0, 0, 1, 1], [], []>} : vector<2x32xf32>, vector<32x32xf32>, vector<2x32xf32> -> vector<2x32xf32>
    %c0_42 = arith.constant 0 : index
    %c0_43 = arith.constant 0 : index
    %73 = vector.load %arg9[%c0_42, %c0_43] : memref<1x32xf32, #tpu.memory_space<vmem>>, vector<1x32xf32>
    %74 = vector.broadcast %73 : vector<1x32xf32> to vector<2x32xf32>
    %75 = arith.addf %72, %74 : vector<2x32xf32>
    %c0_44 = arith.constant 0 : index
    %c0_45 = arith.constant 0 : index
    %76 = vector.load %arg12[%c0_44, %c0_45] : memref<2x32xf32, #tpu.memory_space<vmem>>, vector<2x32xf32>
    tpu.vector_store %arg12[%c0_44, %c0_45], %75 {strides = array<i32>} : memref<2x32xf32, #tpu.memory_space<vmem>>, vector<2x32xf32>,
    return
  }
  func.func @transform_0(%arg0: i32) -> (i32, i32, i32) {
    %c0_i32 = arith.constant 0 : i32
    %c0_i32_0 = arith.constant 0 : i32
    %c0_i32_1 = arith.constant 0 : i32
    return %arg0, %c0_i32, %c0_i32_0 : i32, i32, i32
  }
  func.func @transform_1(%arg0: i32) -> (i32, i32) {
    %c0_i32 = arith.constant 0 : i32
    %c0_i32_0 = arith.constant 0 : i32
    %c0_i32_1 = arith.constant 0 : i32
    return %c0_i32, %c0_i32_0 : i32, i32
  }
  func.func @transform_2(%arg0: i32) -> (i32, i32) {
    %c0_i32 = arith.constant 0 : i32
    %c0_i32_0 = arith.constant 0 : i32
    %c0_i32_1 = arith.constant 0 : i32
    return %c0_i32, %c0_i32_0 : i32, i32
  }
  func.func @transform_3(%arg0: i32) -> (i32, i32) {
    %c0_i32 = arith.constant 0 : i32
    %c0_i32_0 = arith.constant 0 : i32
    %c0_i32_1 = arith.constant 0 : i32
    return %c0_i32, %c0_i32_0 : i32, i32
  }
  func.func @transform_4(%arg0: i32) -> (i32, i32) {
    %c0_i32 = arith.constant 0 : i32
    %c0_i32_0 = arith.constant 0 : i32
    %c0_i32_1 = arith.constant 0 : i32
    return %c0_i32, %c0_i32_0 : i32, i32
  }
  func.func @transform_5(%arg0: i32) -> (i32, i32) {
    %c0_i32 = arith.constant 0 : i32
    %c0_i32_0 = arith.constant 0 : i32
    %c0_i32_1 = arith.constant 0 : i32
    return %c0_i32, %c0_i32_0 : i32, i32
  }
  func.func @transform_6(%arg0: i32) -> (i32, i32) {
    %c0_i32 = arith.constant 0 : i32
    %c0_i32_0 = arith.constant 0 : i32
    %c0_i32_1 = arith.constant 0 : i32
    return %c0_i32, %c0_i32_0 : i32, i32
  }
  func.func @transform_7(%arg0: i32) -> (i32, i32) {
    %c0_i32 = arith.constant 0 : i32
    %c0_i32_0 = arith.constant 0 : i32
    %c0_i32_1 = arith.constant 0 : i32
    return %c0_i32, %c0_i32_0 : i32, i32
  }
  func.func @transform_8(%arg0: i32) -> (i32, i32) {
    %c0_i32 = arith.constant 0 : i32
    %c0_i32_0 = arith.constant 0 : i32
    %c0_i32_1 = arith.constant 0 : i32
    return %c0_i32, %c0_i32_0 : i32, i32
  }
  func.func @transform_9(%arg0: i32) -> (i32, i32) {
    %c0_i32 = arith.constant 0 : i32
    %c0_i32_0 = arith.constant 0 : i32
    %c0_i32_1 = arith.constant 0 : i32
    return %c0_i32, %c0_i32_0 : i32, i32
  }
  func.func @transform_10(%arg0: i32) -> (i32, i32) {
    %c0_i32 = arith.constant 0 : i32
    %c0_i32_0 = arith.constant 0 : i32
    %c0_i32_1 = arith.constant 0 : i32
    return %c0_i32, %c0_i32_0 : i32, i32
  }
  func.func @transform_11(%arg0: i32) -> (i32, i32) {
    %c0_i32 = arith.constant 0 : i32
    %c0_i32_0 = arith.constant 0 : i32
    return %arg0, %c0_i32 : i32, i32
  }
}

</mosaic_0001>

<llo_original>
// kernel: tpu_custom_call.1
$region0: #{tpu_custom_call.1}
  #allocation0 [shape = 'u32[]', space=smem, size = 0x4, offset = 0x4, fixed_abs, tag = 'smem constant byte address 0x4 - core index']
  #allocation1 [shape = 'u32[144,128]{1,0:T(1,128)}', space=vmem, size = 0x12000, scoped, tag = 'internal scratch']
  %s0 = inlined_call_operand.vmem [shape: f32[2,16,32], index: 0, kind: input, shape index: {}]
  %s1 = inlined_call_operand.vmem [shape: f32[1,32], index: 1, kind: input, shape index: {}]
  %s2 = inlined_call_operand.hbm [shape: f32[16,32], index: 2, kind: input, shape index: {}]
  %s3 = inlined_call_operand.hbm [shape: f32[32,32], index: 3, kind: input, shape index: {}]
  %s4 = inlined_call_operand.vmem [shape: f32[1,32], index: 4, kind: input, shape index: {}]
  %s5 = inlined_call_operand.hbm [shape: f32[32,64], index: 5, kind: input, shape index: {}]
  %s6 = inlined_call_operand.vmem [shape: f32[1,64], index: 6, kind: input, shape index: {}]
  %s7 = inlined_call_operand.hbm [shape: f32[32,32], index: 7, kind: input, shape index: {}]
  %s8 = inlined_call_operand.vmem [shape: f32[1,32], index: 8, kind: input, shape index: {}]
  %s9 = inlined_call_operand.vmem [shape: f32[32,4], index: 9, kind: input, shape index: {}]
  %s10 = inlined_call_operand.vmem [shape: f32[4,32], index: 10, kind: input, shape index: {}]
  %s11 = inlined_call_operand.hbm [shape: f32[2,32], index: 11, kind: output, shape index: {}]
  %s12 = sld [smem:[#allocation0]]
  $region70: #{tpu_custom_call.1} parent=0
    _
  %s14 = ssub.s32 1, %s12
  %s15 = scalar_select 0, %s14, %s12
  $region1: #{tpu_custom_call.1} parent=0
    #allocation2 [shape = 'u8[8192]{0}', space=vmem, size = 0x2000, scoped, tag = 'input window, operand 2, single buffered']
    #allocation3 [shape = 's32[1]{0}', space=sflag, size = 0x4, scoped, tag = 'scoped memory for tpu_custom_call.1']
    #allocation4 [shape = 's32[1]{0}', space=sflag, size = 0x4, scoped, tag = 'scoped memory for tpu_custom_call.1']
    #allocation5 [shape = 'u8[16384]{0}', space=vmem, size = 0x4000, scoped, tag = 'input window, operand 3, single buffered']
    #allocation6 [shape = 's32[1]{0}', space=sflag, size = 0x4, scoped, tag = 'scoped memory for tpu_custom_call.1']
    #allocation7 [shape = 'u8[16384]{0}', space=vmem, size = 0x4000, scoped, tag = 'input window, operand 5, single buffered']
    #allocation8 [shape = 'u8[16384]{0}', space=vmem, size = 0x4000, scoped, tag = 'input window, operand 7, single buffered']
    #allocation9 [shape = 's32[1]{0}', space=sflag, size = 0x4, scoped, tag = 'scoped memory for tpu_custom_call.1']
    #allocation10 [shape = 'u8[1024]{0}', space=vmem, size = 0x400, scoped, tag = 'output window, operand 0, single buffered']
    %16 = vsyncpa [#allocation3], 0
    %17 = vsyncpa [#allocation6], 0
    %18 = vsyncpa [#allocation9], 0
    %19 = vsyncpa [#allocation4], 0
    // Predicated region
    $region2: #{tpu_custom_call.1} parent=1 // pred_check
      _
    $region3: #{tpu_custom_call.1} parent=1 // pred_check_branch
      %21 = sbr.rel (0) target = $region5
    $region4: #{tpu_custom_call.1} parent=1 // pred_region
      _
    $region5: #{tpu_custom_call.1} parent=1 // pred_fallthru
      _
    // Predicated region
    $region6: #{tpu_custom_call.1} parent=1 // pred_check
      _
    $region7: #{tpu_custom_call.1} parent=1 // pred_check_branch
      %23 = sbr.rel (0) target = $region9
    $region8: #{tpu_custom_call.1} parent=1 // pred_region
      _
    $region9: #{tpu_custom_call.1} parent=1 // pred_fallthru
      _
    // Predicated region
    $region10: #{tpu_custom_call.1} parent=1 // pred_check
      _
    $region11: #{tpu_custom_call.1} parent=1 // pred_check_branch
      %25 = sbr.rel (0) target = $region13
    $region12: #{tpu_custom_call.1} parent=1 // pred_region
      %s27 = ssub.s32 256, 256
      %28 = vsyncadd [#allocation3], %s27
      %s29 = sshll.u32 [#allocation2], 4
      %s30 = int_to_ptr.vmem [resolvable:$true] %s29
      %35 = dma.hbm_to_vmem [thread:$0]  %s2, 256, %s30, [#allocation3], 128, 128, 8
    $region13: #{tpu_custom_call.1} parent=1 // pred_fallthru
      _
    // Predicated region
    $region14: #{tpu_custom_call.1} parent=1 // pred_check
      _
    $region15: #{tpu_custom_call.1} parent=1 // pred_check_branch
      %37 = sbr.rel (0) target = $region17
    $region16: #{tpu_custom_call.1} parent=1 // pred_region
      %s39 = ssub.s32 512, 512
      %40 = vsyncadd [#allocation6], %s39
      %s41 = sshll.u32 [#allocation5], 4
      %s42 = int_to_ptr.vmem [resolvable:$true] %s41
      %47 = dma.hbm_to_vmem [thread:$0]  %s3, 512, %s42, [#allocation6], 128, 128, 8
    $region17: #{tpu_custom_call.1} parent=1 // pred_fallthru
      _
    // Predicated region
    $region18: #{tpu_custom_call.1} parent=1 // pred_check
      _
    $region19: #{tpu_custom_call.1} parent=1 // pred_check_branch
      %49 = sbr.rel (0) target = $region21
    $region20: #{tpu_custom_call.1} parent=1 // pred_region
      _
    $region21: #{tpu_custom_call.1} parent=1 // pred_fallthru
      _
    // Predicated region
    $region22: #{tpu_custom_call.1} parent=1 // pred_check
      _
    $region23: #{tpu_custom_call.1} parent=1 // pred_check_branch
      %51 = sbr.rel (0) target = $region25
    $region24: #{tpu_custom_call.1} parent=1 // pred_region
      %s53 = ssub.s32 512, 512
      %54 = vsyncadd [#allocation6], %s53
      %s55 = sshll.u32 [#allocation7], 4
      %s56 = int_to_ptr.vmem [resolvable:$true] %s55
      %61 = dma.hbm_to_vmem [thread:$0]  %s5, 512, %s56, [#allocation6], 128, 128, 8
    $region25: #{tpu_custom_call.1} parent=1 // pred_fallthru
      _
    // Predicated region
    $region26: #{tpu_custom_call.1} parent=1 // pred_check
      _
    $region27: #{tpu_custom_call.1} parent=1 // pred_check_branch
      %63 = sbr.rel (0) target = $region29
    $region28: #{tpu_custom_call.1} parent=1 // pred_region
      _
    $region29: #{tpu_custom_call.1} parent=1 // pred_fallthru
      _
    // Predicated region
    $region30: #{tpu_custom_call.1} parent=1 // pred_check
      _
    $region31: #{tpu_custom_call.1} parent=1 // pred_check_branch
      %65 = sbr.rel (0) target = $region33
    $region32: #{tpu_custom_call.1} parent=1 // pred_region
      %s67 = ssub.s32 512, 512
      %68 = vsyncadd [#allocation9], %s67
      %s69 = sshll.u32 [#allocation8], 4
      %s70 = int_to_ptr.vmem [resolvable:$true] %s69
      %75 = dma.hbm_to_vmem [thread:$0]  %s7, 512, %s70, [#allocation9], 128, 128, 8
    $region33: #{tpu_custom_call.1} parent=1 // pred_fallthru
      _
    // Predicated region
    $region34: #{tpu_custom_call.1} parent=1 // pred_check
      _
    $region35: #{tpu_custom_call.1} parent=1 // pred_check_branch
      %77 = sbr.rel (0) target = $region37
    $region36: #{tpu_custom_call.1} parent=1 // pred_region
      _
    $region37: #{tpu_custom_call.1} parent=1 // pred_fallthru
      _
    // Predicated region
    $region38: #{tpu_custom_call.1} parent=1 // pred_check
      _
    $region39: #{tpu_custom_call.1} parent=1 // pred_check_branch
      %79 = sbr.rel (0) target = $region41
    $region40: #{tpu_custom_call.1} parent=1 // pred_region
      _
    $region41: #{tpu_custom_call.1} parent=1 // pred_fallthru
      _
    // Predicated region
    $region42: #{tpu_custom_call.1} parent=1 // pred_check
      _
    $region43: #{tpu_custom_call.1} parent=1 // pred_check_branch
      %81 = sbr.rel (0) target = $region45
    $region44: #{tpu_custom_call.1} parent=1 // pred_region
      _
    $region45: #{tpu_custom_call.1} parent=1 // pred_fallthru
      _
    // Predicated region
    $region46: #{tpu_custom_call.1} parent=1 // pred_check
      _
    $region47: #{tpu_custom_call.1} parent=1 // pred_check_branch
      %83 = sbr.rel (0) target = $region49
    $region48: #{tpu_custom_call.1} parent=1 // pred_region
      %84 = dma.done [#allocation3], 256
    $region49: #{tpu_custom_call.1} parent=1 // pred_fallthru
      _
    // Predicated region
    $region50: #{tpu_custom_call.1} parent=1 // pred_check
      _
    $region51: #{tpu_custom_call.1} parent=1 // pred_check_branch
      %86 = sbr.rel (0) target = $region53
    $region52: #{tpu_custom_call.1} parent=1 // pred_region
      %87 = dma.done [#allocation6], 512
    $region53: #{tpu_custom_call.1} parent=1 // pred_fallthru
      _
    // Predicated region
    $region54: #{tpu_custom_call.1} parent=1 // pred_check
      _
    $region55: #{tpu_custom_call.1} parent=1 // pred_check_branch
      %89 = sbr.rel (0) target = $region57
    $region56: #{tpu_custom_call.1} parent=1 // pred_region
      %90 = dma.done [#allocation6], 512
    $region57: #{tpu_custom_call.1} parent=1 // pred_fallthru
      _
    // Predicated region
    $region58: #{tpu_custom_call.1} parent=1 // pred_check
      _
    $region59: #{tpu_custom_call.1} parent=1 // pred_check_branch
      %92 = sbr.rel (0) target = $region61
    $region60: #{tpu_custom_call.1} parent=1 // pred_region
      %93 = dma.done [#allocation9], 512
    $region61: #{tpu_custom_call.1} parent=1 // pred_fallthru
      _
    %v94 = vld [vmem:[%s0] sm:$0xff]
    %v95 = vld [vmem:[%s0 + $0x8] sm:$0xff]
    %v96 = vld [vmem:[%s0 + $0x10] sm:$0xff]
    %v97 = vld [vmem:[%s0 + $0x18] sm:$0xff]
    %vm98 = vcmask 261120
    %v99 = vsel %vm98, %v94, 0.0
    %v100 = vsel %vm98, %v95, 0.0
    %v101 = vadd.f32 %v99, %v100
    %v102 = vrot.slane %v101, 4
    %v103 = vadd.f32 %v101, %v102
    %v104 = vrot.slane %v103, 2
    %v105 = vadd.f32 %v103, %v104
    %v106 = vrot.slane %v105, 1
    %v107 = vadd.f32 %v105, %v106
    %v108 = vsel %vm98, %v96, 0.0
    %v109 = vsel %vm98, %v97, 0.0
    %v110 = vadd.f32 %v108, %v109
    %v111 = vrot.slane %v110, 4
    %v112 = vadd.f32 %v110, %v111
    %v113 = vrot.slane %v112, 2
    %v114 = vadd.f32 %v112, %v113
    %v115 = vrot.slane %v114, 1
    %v116 = vadd.f32 %v114, %v115
    %v117 = vrcp.pop 16.0
    %v118 = vmul.f32 %v107, %v117
    %v119 = vmul.f32 %v116, %v117
    %v120 = vld [vmem:[%s1] sm:$0x1]
    %v122 = vlaneseq
    %v123 = vshrl.u32 %v122, 7
    %v124 = vsub.s32 0, %v123
    %v125 = vrot.slane %v120, %v124
    %v127 = vadd.f32 %v118, %v125
    %v128 = vadd.f32 %v119, %v125
    %v129 = vld [vmem:[#allocation2] sm:$0xff]
    %v130 = vld [vmem:[#allocation2 + $0x8] sm:$0xff]
    %v131 = vadd.f32 %v94, %v129
    %v132 = vadd.f32 %v95, %v130
    %v133 = vadd.f32 %v96, %v129
    %v134 = vadd.f32 %v97, %v130
    %v135 = vld [vmem:[#allocation7] sm:$0xff]
    %v136 = vld [vmem:[#allocation7 + $0x8] sm:$0xff]
    %v137 = vld [vmem:[#allocation7 + $0x10] sm:$0xff]
    %v138 = vld [vmem:[#allocation7 + $0x18] sm:$0xff]
    %v139 = vld [vmem:[%s6] sm:$0x1]
    %v141 = vlaneseq
    %v142 = vshrl.u32 %v141, 7
    %v143 = vsub.s32 0, %v142
    %v144 = vrot.slane %v139, %v143
    %v147 = vsel %vm98, %v131, 0
    %v150 = vsel %vm98, %v132, 0
    %v153 = vsel %vm98, %v133, 0
    %v156 = vsel %vm98, %v134, 0
    %158 = vmatprep.subr.mxu0 0.0
    %159 = vmatpush1.msra.mxu0 %v135
    %160 = vmatprep.subr.mxu0 0.0
    %161 = vmatpush1.msra.mxu0 %v136
    %162 = vmatprep.subr.mxu0 0.0
    %163 = vmatpush1.msra.mxu0 %v137
    %164 = vmatprep.subr.mxu0 0.0
    %165 = vmatpush1.msra.mxu0 %v138
    %166 = vmatprep.subr.mxu0 0.0
    %167 = vmatpush1.msra.mxu0 0.0
    %168 = vmatprep.subr.mxu0 0.0
    %169 = vmatpush1.msra.mxu0 0.0
    %170 = vmatprep.subr.mxu0 0.0
    %171 = vmatpush1.msra.mxu0 0.0
    %172 = vmatprep.subr.mxu0 0.0
    %173 = vmatpush1.msra.mxu0 0.0
    %174 = vmatprep.subr.mxu0 0.0
    %175 = vmatpush1.msra.mxu0 0.0
    %176 = vmatprep.subr.mxu0 0.0
    %177 = vmatpush1.msra.mxu0 0.0
    %178 = vmatprep.subr.mxu0 0.0
    %179 = vmatpush1.msra.mxu0 0.0
    %180 = vmatprep.subr.mxu0 0.0
    %181 = vmatpush1.msra.mxu0 0.0
    %182 = vmatprep.subr.mxu0 0.0
    %183 = vmatpush1.msra.mxu0 0.0
    %184 = vmatprep.subr.mxu0 0.0
    %185 = vmatpush1.msra.mxu0 0.0
    %186 = vmatprep.subr.mxu0 0.0
    %187 = vmatpush1.msra.mxu0 0.0
    %188 = vmatprep.subr.mxu0 0.0
    %189 = vmatpush1.msra.mxu0 0.0
    %190 = vmatprep.subr.mxu0 0.0
    %191 = vmatpush1.msra.mxu0 0.0
    %192 = vmatprep.subr.mxu0 0.0
    %193 = vmatpush1.msra.mxu0 0.0
    %194 = vmatprep.subr.mxu0 0.0
    %195 = vmatpush1.msra.mxu0 0.0
    %196 = vmatprep.subr.mxu0 0.0
    %197 = vmatpush1.msra.mxu0 0.0
    %198 = vmatprep.subr.mxu0 0.0
    %199 = vmatpush1.msra.mxu0 0.0
    %200 = vmatprep.subr.mxu0 0.0
    %201 = vmatpush1.msra.mxu0 0.0
    %202 = vmatprep.subr.mxu0 0.0
    %203 = vmatpush1.msra.mxu0 0.0
    %204 = vmatprep.subr.mxu0 0.0
    %205 = vmatpush1.msra.mxu0 0.0
    %206 = vmatprep.subr.mxu0 0.0
    %207 = vmatpush1.msra.mxu0 0.0
    %208 = vmatprep.subr.mxu0 0.0
    %209 = vmatpush1.msra.mxu0 0.0
    %210 = vmatprep.subr.mxu0 0.0
    %211 = vmatpush1.msra.mxu0 0.0
    %212 = vmatprep.subr.mxu0 0.0
    %213 = vmatpush1.msra.mxu0 0.0
    %214 = vmatprep.subr.mxu0 0.0
    %215 = vmatpush1.msra.mxu0 0.0
    %216 = vmatprep.subr.mxu0 0.0
    %217 = vmatpush1.msra.mxu0 0.0
    %218 = vmatprep.subr.mxu0 0.0
    %219 = vmatpush1.msra.mxu0 0.0
    %220 = vmatprep.subr.mxu0 0.0
    %221 = vmatpush1.msra.mxu0 0.0
    %222 = vmatprep.mubr.f32.mxu0 0.0
    %223 = vmatmul.mubr.f32.gmra.mrb[0].mxu0 %v147
    %v224 = vpop.f32.mrb[0].mxu0
    %v225 = vadd.f32 %v144, %v224
    %v226 = vpop.f32.mrb[0].mxu0
    %227 = vmatprep.mubr.f32.mxu0 0.0
    %228 = vmatmul.mubr.f32.gmra.mrb[0].mxu0 %v150
    %v229 = vpop.f32.mrb[0].mxu0
    %v230 = vadd.f32 %v144, %v229
    %v231 = vpop.f32.mrb[0].mxu0
    %232 = vmatprep.mubr.f32.mxu0 0.0
    %233 = vmatmul.mubr.f32.gmra.mrb[0].mxu0 %v153
    %v234 = vpop.f32.mrb[0].mxu0
    %v235 = vadd.f32 %v144, %v234
    %v236 = vpop.f32.mrb[0].mxu0
    %237 = vmatprep.mubr.f32.mxu0 0.0
    %238 = vmatmul.mubr.f32.gmra.mrb[0].mxu0 %v156
    %v239 = vpop.f32.mrb[0].mxu0
    %v240 = vadd.f32 %v144, %v239
    %v241 = vpop.f32.mrb[0].mxu0
    %242 = vdwg.mxu0
    %v243 = vld [vmem:[#allocation5] sm:$0xff]
    %v244 = vld [vmem:[#allocation5 + $0x8] sm:$0xff]
    %v245 = vld [vmem:[#allocation5 + $0x10] sm:$0xff]
    %v246 = vld [vmem:[#allocation5 + $0x18] sm:$0xff]
    %v247 = vld [vmem:[%s4] sm:$0x1]
    %v249 = vlaneseq
    %v250 = vshrl.u32 %v249, 7
    %v251 = vsub.s32 0, %v250
    %v252 = vrot.slane %v247, %v251
    %v256 = vrot.slane %v128, 7
    %vm257 = vcmask 1041409
    %v258 = vsel %vm257, %v256, %v127
    %v259 = vsel %vm98, %v258, 0
    %261 = vmatprep.subr.mxu0 0.0
    %262 = vmatpush1.msra.mxu0 %v243
    %263 = vmatprep.subr.mxu0 0.0
    %264 = vmatpush1.msra.mxu0 %v244
    %265 = vmatprep.subr.mxu0 0.0
    %266 = vmatpush1.msra.mxu0 %v245
    %267 = vmatprep.subr.mxu0 0.0
    %268 = vmatpush1.msra.mxu0 %v246
    %269 = vmatprep.subr.mxu0 0.0
    %270 = vmatpush1.msra.mxu0 0.0
    %271 = vmatprep.subr.mxu0 0.0
    %272 = vmatpush1.msra.mxu0 0.0
    %273 = vmatprep.subr.mxu0 0.0
    %274 = vmatpush1.msra.mxu0 0.0
    %275 = vmatprep.subr.mxu0 0.0
    %276 = vmatpush1.msra.mxu0 0.0
    %277 = vmatprep.subr.mxu0 0.0
    %278 = vmatpush1.msra.mxu0 0.0
    %279 = vmatprep.subr.mxu0 0.0
    %280 = vmatpush1.msra.mxu0 0.0
    %281 = vmatprep.subr.mxu0 0.0
    %282 = vmatpush1.msra.mxu0 0.0
    %283 = vmatprep.subr.mxu0 0.0
    %284 = vmatpush1.msra.mxu0 0.0
    %285 = vmatprep.subr.mxu0 0.0
    %286 = vmatpush1.msra.mxu0 0.0
    %287 = vmatprep.subr.mxu0 0.0
    %288 = vmatpush1.msra.mxu0 0.0
    %289 = vmatprep.subr.mxu0 0.0
    %290 = vmatpush1.msra.mxu0 0.0
    %291 = vmatprep.subr.mxu0 0.0
    %292 = vmatpush1.msra.mxu0 0.0
    %293 = vmatprep.subr.mxu0 0.0
    %294 = vmatpush1.msra.mxu0 0.0
    %295 = vmatprep.subr.mxu0 0.0
    %296 = vmatpush1.msra.mxu0 0.0
    %297 = vmatprep.subr.mxu0 0.0
    %298 = vmatpush1.msra.mxu0 0.0
    %299 = vmatprep.subr.mxu0 0.0
    %300 = vmatpush1.msra.mxu0 0.0
    %301 = vmatprep.subr.mxu0 0.0
    %302 = vmatpush1.msra.mxu0 0.0
    %303 = vmatprep.subr.mxu0 0.0
    %304 = vmatpush1.msra.mxu0 0.0
    %305 = vmatprep.subr.mxu0 0.0
    %306 = vmatpush1.msra.mxu0 0.0
    %307 = vmatprep.subr.mxu0 0.0
    %308 = vmatpush1.msra.mxu0 0.0
    %309 = vmatprep.subr.mxu0 0.0
    %310 = vmatpush1.msra.mxu0 0.0
    %311 = vmatprep.subr.mxu0 0.0
    %312 = vmatpush1.msra.mxu0 0.0
    %313 = vmatprep.subr.mxu0 0.0
    %314 = vmatpush1.msra.mxu0 0.0
    %315 = vmatprep.subr.mxu0 0.0
    %316 = vmatpush1.msra.mxu0 0.0
    %317 = vmatprep.subr.mxu0 0.0
    %318 = vmatpush1.msra.mxu0 0.0
    %319 = vmatprep.subr.mxu0 0.0
    %320 = vmatpush1.msra.mxu0 0.0
    %321 = vmatprep.subr.mxu0 0.0
    %322 = vmatpush1.msra.mxu0 0.0
    %323 = vmatprep.subr.mxu0 0.0
    %324 = vmatpush1.msra.mxu0 0.0
    %325 = vmatprep.mubr.f32.mxu0 0.0
    %326 = vmatmul.mubr.f32.gmra.mrb[0].mxu0 %v259
    %v327 = vpop.f32.mrb[0].mxu0
    %v328 = vadd.f32 %v252, %v327
    %v329 = vpop.f32.mrb[0].mxu0
    %330 = vdwg.mxu0
    %331 = vmatprep.subr.mxu0 0.0
    %332 = vmatpush1.msra.mxu0 %v135
    %333 = vmatprep.subr.mxu0 0.0
    %334 = vmatpush1.msra.mxu0 %v136
    %335 = vmatprep.subr.mxu0 0.0
    %336 = vmatpush1.msra.mxu0 %v137
    %337 = vmatprep.subr.mxu0 0.0
    %338 = vmatpush1.msra.mxu0 %v138
    %339 = vmatprep.subr.mxu0 0.0
    %340 = vmatpush1.msra.mxu0 0.0
    %341 = vmatprep.subr.mxu0 0.0
    %342 = vmatpush1.msra.mxu0 0.0
    %343 = vmatprep.subr.mxu0 0.0
    %344 = vmatpush1.msra.mxu0 0.0
    %345 = vmatprep.subr.mxu0 0.0
    %346 = vmatpush1.msra.mxu0 0.0
    %347 = vmatprep.subr.mxu0 0.0
    %348 = vmatpush1.msra.mxu0 0.0
    %349 = vmatprep.subr.mxu0 0.0
    %350 = vmatpush1.msra.mxu0 0.0
    %351 = vmatprep.subr.mxu0 0.0
    %352 = vmatpush1.msra.mxu0 0.0
    %353 = vmatprep.subr.mxu0 0.0
    %354 = vmatpush1.msra.mxu0 0.0
    %355 = vmatprep.subr.mxu0 0.0
    %356 = vmatpush1.msra.mxu0 0.0
    %357 = vmatprep.subr.mxu0 0.0
    %358 = vmatpush1.msra.mxu0 0.0
    %359 = vmatprep.subr.mxu0 0.0
    %360 = vmatpush1.msra.mxu0 0.0
    %361 = vmatprep.subr.mxu0 0.0
    %362 = vmatpush1.msra.mxu0 0.0
    %363 = vmatprep.subr.mxu0 0.0
    %364 = vmatpush1.msra.mxu0 0.0
    %365 = vmatprep.subr.mxu0 0.0
    %366 = vmatpush1.msra.mxu0 0.0
    %367 = vmatprep.subr.mxu0 0.0
    %368 = vmatpush1.msra.mxu0 0.0
    %369 = vmatprep.subr.mxu0 0.0
    %370 = vmatpush1.msra.mxu0 0.0
    %371 = vmatprep.subr.mxu0 0.0
    %372 = vmatpush1.msra.mxu0 0.0
    %373 = vmatprep.subr.mxu0 0.0
    %374 = vmatpush1.msra.mxu0 0.0
    %375 = vmatprep.subr.mxu0 0.0
    %376 = vmatpush1.msra.mxu0 0.0
    %377 = vmatprep.subr.mxu0 0.0
    %378 = vmatpush1.msra.mxu0 0.0
    %379 = vmatprep.subr.mxu0 0.0
    %380 = vmatpush1.msra.mxu0 0.0
    %381 = vmatprep.subr.mxu0 0.0
    %382 = vmatpush1.msra.mxu0 0.0
    %383 = vmatprep.subr.mxu0 0.0
    %384 = vmatpush1.msra.mxu0 0.0
    %385 = vmatprep.subr.mxu0 0.0
    %386 = vmatpush1.msra.mxu0 0.0
    %387 = vmatprep.subr.mxu0 0.0
    %388 = vmatpush1.msra.mxu0 0.0
    %389 = vmatprep.subr.mxu0 0.0
    %390 = vmatpush1.msra.mxu0 0.0
    %391 = vmatprep.subr.mxu0 0.0
    %392 = vmatpush1.msra.mxu0 0.0
    %393 = vmatprep.subr.mxu0 0.0
    %394 = vmatpush1.msra.mxu0 0.0
    %395 = vmatprep.mubr.f32.mxu0 0.0
    %396 = vmatmul.mubr.f32.gmra.mrb[0].mxu0 %v259
    %v397 = vpop.f32.mrb[0].mxu0
    %v398 = vadd.f32 %v144, %v397
    %v399 = vpop.f32.mrb[0].mxu0
    %400 = vdwg.mxu0
    %v403 = vunpack.c.l.s4 1966171168
    %v404 = vunpack.c.0.s8 %v403
    %v405 = vlaneseq
    %v406 = vshrl.u32 %v405, 7
    %v407 = vsub.s32 %v404, %v406
    %v408 = vrot.slane %v328, %v407
    %v409 = vcombine.high %v408, %v408
    %v411 = vunpack.c.l.s4 1966171168
    %v412 = vunpack.c.0.s8 %v411
    %v413 = vlaneseq
    %v414 = vshrl.u32 %v413, 7
    %v415 = vsub.s32 %v412, %v414
    %v416 = vrot.slane %v408, %v415
    %v418 = vunpack.c.l.s4 1966171168
    %v419 = vunpack.c.0.s8 %v418
    %v420 = vlaneseq
    %v421 = vshrl.u32 %v420, 7
    %v422 = vsub.s32 %v419, %v421
    %v423 = vrot.slane %v409, %v422
    %v424 = vlaneseq
    %v425 = vshrl.u32 %v424, 7
    %v426 = vsub.s32 0, %v425
    %v427 = vrot.slane %v416, %v426
    %v428 = vlaneseq
    %v429 = vshrl.u32 %v428, 7
    %v430 = vsub.s32 0, %v429
    %v431 = vrot.slane %v423, %v430
    %v434 = vmul.f32 %v427, %v225
    %v435 = vmul.f32 %v427, %v230
    %v436 = vmul.f32 %v431, %v235
    %v437 = vmul.f32 %v431, %v240
    %v438 = vmul.f32 %v434, 0.35355338
    %v439 = vmul.f32 %v435, 0.35355338
    %v440 = vmul.f32 %v436, 0.35355338
    %v441 = vmul.f32 %v437, 0.35355338
    %v442 = vld [vmem:[%s9] sm:$0xff]
    %v443 = vld [vmem:[%s9 + $0x8] sm:$0xff]
    %v444 = vld [vmem:[%s9 + $0x10] sm:$0xff]
    %v445 = vld [vmem:[%s9 + $0x18] sm:$0xff]
    %v447 = vsel %vm98, %v438, 0
    %v450 = vsel %vm98, %v439, 0
    %v453 = vsel %vm98, %v440, 0
    %v456 = vsel %vm98, %v441, 0
    %458 = vmatprep.subr.mxu0 0.0
    %459 = vmatpush1.msra.mxu0 %v442
    %460 = vmatprep.subr.mxu0 0.0
    %461 = vmatpush1.msra.mxu0 %v443
    %462 = vmatprep.subr.mxu0 0.0
    %463 = vmatpush1.msra.mxu0 %v444
    %464 = vmatprep.subr.mxu0 0.0
    %465 = vmatpush1.msra.mxu0 %v445
    %466 = vmatprep.subr.mxu0 0.0
    %467 = vmatpush1.msra.mxu0 0.0
    %468 = vmatprep.subr.mxu0 0.0
    %469 = vmatpush1.msra.mxu0 0.0
    %470 = vmatprep.subr.mxu0 0.0
    %471 = vmatpush1.msra.mxu0 0.0
    %472 = vmatprep.subr.mxu0 0.0
    %473 = vmatpush1.msra.mxu0 0.0
    %474 = vmatprep.subr.mxu0 0.0
    %475 = vmatpush1.msra.mxu0 0.0
    %476 = vmatprep.subr.mxu0 0.0
    %477 = vmatpush1.msra.mxu0 0.0
    %478 = vmatprep.subr.mxu0 0.0
    %479 = vmatpush1.msra.mxu0 0.0
    %480 = vmatprep.subr.mxu0 0.0
    %481 = vmatpush1.msra.mxu0 0.0
    %482 = vmatprep.subr.mxu0 0.0
    %483 = vmatpush1.msra.mxu0 0.0
    %484 = vmatprep.subr.mxu0 0.0
    %485 = vmatpush1.msra.mxu0 0.0
    %486 = vmatprep.subr.mxu0 0.0
    %487 = vmatpush1.msra.mxu0 0.0
    %488 = vmatprep.subr.mxu0 0.0
    %489 = vmatpush1.msra.mxu0 0.0
    %490 = vmatprep.subr.mxu0 0.0
    %491 = vmatpush1.msra.mxu0 0.0
    %492 = vmatprep.subr.mxu0 0.0
    %493 = vmatpush1.msra.mxu0 0.0
    %494 = vmatprep.subr.mxu0 0.0
    %495 = vmatpush1.msra.mxu0 0.0
    %496 = vmatprep.subr.mxu0 0.0
    %497 = vmatpush1.msra.mxu0 0.0
    %498 = vmatprep.subr.mxu0 0.0
    %499 = vmatpush1.msra.mxu0 0.0
    %500 = vmatprep.subr.mxu0 0.0
    %501 = vmatpush1.msra.mxu0 0.0
    %502 = vmatprep.subr.mxu0 0.0
    %503 = vmatpush1.msra.mxu0 0.0
    %504 = vmatprep.subr.mxu0 0.0
    %505 = vmatpush1.msra.mxu0 0.0
    %506 = vmatprep.subr.mxu0 0.0
    %507 = vmatpush1.msra.mxu0 0.0
    %508 = vmatprep.subr.mxu0 0.0
    %509 = vmatpush1.msra.mxu0 0.0
    %510 = vmatprep.subr.mxu0 0.0
    %511 = vmatpush1.msra.mxu0 0.0
    %512 = vmatprep.subr.mxu0 0.0
    %513 = vmatpush1.msra.mxu0 0.0
    %514 = vmatprep.subr.mxu0 0.0
    %515 = vmatpush1.msra.mxu0 0.0
    %516 = vmatprep.subr.mxu0 0.0
    %517 = vmatpush1.msra.mxu0 0.0
    %518 = vmatprep.subr.mxu0 0.0
    %519 = vmatpush1.msra.mxu0 0.0
    %520 = vmatprep.subr.mxu0 0.0
    %521 = vmatpush1.msra.mxu0 0.0
    %522 = vmatprep.mubr.f32.mxu0 0.0
    %523 = vmatmul.mubr.f32.gmra.mrb[0].mxu0 %v447
    %v524 = vpop.f32.mrb[0].mxu0
    %v525 = vadd.f32 0.0, %v524
    %v526 = vpop.f32.mrb[0].mxu0
    %527 = vmatprep.mubr.f32.mxu0 0.0
    %528 = vmatmul.mubr.f32.gmra.mrb[0].mxu0 %v450
    %v529 = vpop.f32.mrb[0].mxu0
    %v530 = vadd.f32 0.0, %v529
    %v531 = vpop.f32.mrb[0].mxu0
    %532 = vmatprep.mubr.f32.mxu0 0.0
    %533 = vmatmul.mubr.f32.gmra.mrb[0].mxu0 %v453
    %v534 = vpop.f32.mrb[0].mxu0
    %v535 = vadd.f32 0.0, %v534
    %v536 = vpop.f32.mrb[0].mxu0
    %537 = vmatprep.mubr.f32.mxu0 0.0
    %538 = vmatmul.mubr.f32.gmra.mrb[0].mxu0 %v456
    %v539 = vpop.f32.mrb[0].mxu0
    %v540 = vadd.f32 0.0, %v539
    %v541 = vpop.f32.mrb[0].mxu0
    %542 = vdwg.mxu0
    %v543 = vmul.f32 %v328, %v398
    %v544 = vmul.f32 %v543, 0.35355338
    %v546 = vsel %vm98, %v544, 0
    %548 = vmatprep.subr.mxu0 0.0
    %549 = vmatpush1.msra.mxu0 %v442
    %550 = vmatprep.subr.mxu0 0.0
    %551 = vmatpush1.msra.mxu0 %v443
    %552 = vmatprep.subr.mxu0 0.0
    %553 = vmatpush1.msra.mxu0 %v444
    %554 = vmatprep.subr.mxu0 0.0
    %555 = vmatpush1.msra.mxu0 %v445
    %556 = vmatprep.subr.mxu0 0.0
    %557 = vmatpush1.msra.mxu0 0.0
    %558 = vmatprep.subr.mxu0 0.0
    %559 = vmatpush1.msra.mxu0 0.0
    %560 = vmatprep.subr.mxu0 0.0
    %561 = vmatpush1.msra.mxu0 0.0
    %562 = vmatprep.subr.mxu0 0.0
    %563 = vmatpush1.msra.mxu0 0.0
    %564 = vmatprep.subr.mxu0 0.0
    %565 = vmatpush1.msra.mxu0 0.0
    %566 = vmatprep.subr.mxu0 0.0
    %567 = vmatpush1.msra.mxu0 0.0
    %568 = vmatprep.subr.mxu0 0.0
    %569 = vmatpush1.msra.mxu0 0.0
    %570 = vmatprep.subr.mxu0 0.0
    %571 = vmatpush1.msra.mxu0 0.0
    %572 = vmatprep.subr.mxu0 0.0
    %573 = vmatpush1.msra.mxu0 0.0
    %574 = vmatprep.subr.mxu0 0.0
    %575 = vmatpush1.msra.mxu0 0.0
    %576 = vmatprep.subr.mxu0 0.0
    %577 = vmatpush1.msra.mxu0 0.0
    %578 = vmatprep.subr.mxu0 0.0
    %579 = vmatpush1.msra.mxu0 0.0
    %580 = vmatprep.subr.mxu0 0.0
    %581 = vmatpush1.msra.mxu0 0.0
    %582 = vmatprep.subr.mxu0 0.0
    %583 = vmatpush1.msra.mxu0 0.0
    %584 = vmatprep.subr.mxu0 0.0
    %585 = vmatpush1.msra.mxu0 0.0
    %586 = vmatprep.subr.mxu0 0.0
    %587 = vmatpush1.msra.mxu0 0.0
    %588 = vmatprep.subr.mxu0 0.0
    %589 = vmatpush1.msra.mxu0 0.0
    %590 = vmatprep.subr.mxu0 0.0
    %591 = vmatpush1.msra.mxu0 0.0
    %592 = vmatprep.subr.mxu0 0.0
    %593 = vmatpush1.msra.mxu0 0.0
    %594 = vmatprep.subr.mxu0 0.0
    %595 = vmatpush1.msra.mxu0 0.0
    %596 = vmatprep.subr.mxu0 0.0
    %597 = vmatpush1.msra.mxu0 0.0
    %598 = vmatprep.subr.mxu0 0.0
    %599 = vmatpush1.msra.mxu0 0.0
    %600 = vmatprep.subr.mxu0 0.0
    %601 = vmatpush1.msra.mxu0 0.0
    %602 = vmatprep.subr.mxu0 0.0
    %603 = vmatpush1.msra.mxu0 0.0
    %604 = vmatprep.subr.mxu0 0.0
    %605 = vmatpush1.msra.mxu0 0.0
    %606 = vmatprep.subr.mxu0 0.0
    %607 = vmatpush1.msra.mxu0 0.0
    %608 = vmatprep.subr.mxu0 0.0
    %609 = vmatpush1.msra.mxu0 0.0
    %610 = vmatprep.subr.mxu0 0.0
    %611 = vmatpush1.msra.mxu0 0.0
    %612 = vmatprep.mubr.f32.mxu0 0.0
    %613 = vmatmul.mubr.f32.gmra.mrb[0].mxu0 %v546
    %v614 = vpop.f32.mrb[0].mxu0
    %v615 = vadd.f32 0.0, %v614
    %v616 = vpop.f32.mrb[0].mxu0
    %617 = vdwg.mxu0
    %vm618 = vcmask 31744
    %v619 = vsel %vm618, %v525, -inf
    %v620 = vsel %vm618, %v530, -inf
    %v621 = vmax.f32 %v619, %v620
    %v622 = vrot.slane %v621, 4
    %v623 = vmax.f32 %v621, %v622
    %v624 = vrot.slane %v623, 2
    %v625 = vmax.f32 %v623, %v624
    %v626 = vrot.slane %v625, 1
    %v627 = vmax.f32 %v625, %v626
    %v628 = vsel %vm618, %v535, -inf
    %v629 = vsel %vm618, %v540, -inf
    %v630 = vmax.f32 %v628, %v629
    %v631 = vrot.slane %v630, 4
    %v632 = vmax.f32 %v630, %v631
    %v633 = vrot.slane %v632, 2
    %v634 = vmax.f32 %v632, %v633
    %v635 = vrot.slane %v634, 1
    %v636 = vmax.f32 %v634, %v635
    %v638 = vrot.slane %v615, 1
    %v641 = vmax.f32 %v627, %v615
    %v642 = vmax.f32 %v636, %v638
    %v643 = vlaneseq
    %v644 = vshrl.u32 %v643, 7
    %v645 = vsub.s32 0, %v644
    %v646 = vrot.slane %v641, %v645
    %v647 = vlaneseq
    %v648 = vshrl.u32 %v647, 7
    %v649 = vsub.s32 0, %v648
    %v650 = vrot.slane %v642, %v649
    %v651 = vsub.f32 %v525, %v646
    %v652 = vsub.f32 %v530, %v646
    %v653 = vsub.f32 %v535, %v650
    %v654 = vsub.f32 %v540, %v650
    %v655 = vmul.f32 %v651, 1.442695
    %v656 = vpow.pop %v655
    %v657 = vmul.f32 %v652, 1.442695
    %v658 = vpow.pop %v657
    %v659 = vmul.f32 %v653, 1.442695
    %v660 = vpow.pop %v659
    %v661 = vmul.f32 %v654, 1.442695
    %v662 = vpow.pop %v661
    %v665 = vrot.slane %v642, 7
    %v666 = vsel %vm257, %v665, %v641
    %v668 = vsub.f32 %v615, %v666
    %v669 = vmul.f32 %v668, 1.442695
    %v670 = vpow.pop %v669
    %v671 = vsel %vm618, %v656, 0.0
    %v672 = vsel %vm618, %v658, 0.0
    %v673 = vadd.f32 %v671, %v672
    %v674 = vrot.slane %v673, 4
    %v675 = vadd.f32 %v673, %v674
    %v676 = vrot.slane %v675, 2
    %v677 = vadd.f32 %v675, %v676
    %v678 = vrot.slane %v677, 1
    %v679 = vadd.f32 %v677, %v678
    %v680 = vsel %vm618, %v660, 0.0
    %v681 = vsel %vm618, %v662, 0.0
    %v682 = vadd.f32 %v680, %v681
    %v683 = vrot.slane %v682, 4
    %v684 = vadd.f32 %v682, %v683
    %v685 = vrot.slane %v684, 2
    %v686 = vadd.f32 %v684, %v685
    %v687 = vrot.slane %v686, 1
    %v688 = vadd.f32 %v686, %v687
    %v690 = vrot.slane %v670, 1
    %v693 = vadd.f32 %v679, %v670
    %v694 = vadd.f32 %v688, %v690
    %v695 = vrcp.pop %v693
    %v696 = vrcp.pop %v694
    %v697 = vlaneseq
    %v698 = vshrl.u32 %v697, 7
    %v699 = vsub.s32 0, %v698
    %v700 = vrot.slane %v695, %v699
    %v701 = vlaneseq
    %v702 = vshrl.u32 %v701, 7
    %v703 = vsub.s32 0, %v702
    %v704 = vrot.slane %v696, %v703
    %v705 = vmul.f32 %v656, %v700
    %v706 = vmul.f32 %v658, %v700
    %v707 = vmul.f32 %v660, %v704
    %v708 = vmul.f32 %v662, %v704
    %v711 = vrot.slane %v696, 7
    %v712 = vsel %vm257, %v711, %v695
    %v714 = vmul.f32 %v670, %v712
    %v715 = vld [vmem:[%s10] sm:$0xf]
    %v717 = vsel %vm618, %v705, 0
    %v720 = vsel %vm618, %v706, 0
    %v723 = vsel %vm618, %v707, 0
    %v726 = vsel %vm618, %v708, 0
    %vm728 = vcmask 1043456
    %v730 = vsel %vm728, %v715, 0
    %732 = vmatprep.subr.mxu0 0.0
    %733 = vmatpush1.msra.mxu0 %v730
    %734 = vmatprep.subr.mxu0 0.0
    %735 = vmatpush1.msra.mxu0 0.0
    %736 = vmatprep.subr.mxu0 0.0
    %737 = vmatpush1.msra.mxu0 0.0
    %738 = vmatprep.subr.mxu0 0.0
    %739 = vmatpush1.msra.mxu0 0.0
    %740 = vmatprep.subr.mxu0 0.0
    %741 = vmatpush1.msra.mxu0 0.0
    %742 = vmatprep.subr.mxu0 0.0
    %743 = vmatpush1.msra.mxu0 0.0
    %744 = vmatprep.subr.mxu0 0.0
    %745 = vmatpush1.msra.mxu0 0.0
    %746 = vmatprep.subr.mxu0 0.0
    %747 = vmatpush1.msra.mxu0 0.0
    %748 = vmatprep.subr.mxu0 0.0
    %749 = vmatpush1.msra.mxu0 0.0
    %750 = vmatprep.subr.mxu0 0.0
    %751 = vmatpush1.msra.mxu0 0.0
    %752 = vmatprep.subr.mxu0 0.0
    %753 = vmatpush1.msra.mxu0 0.0
    %754 = vmatprep.subr.mxu0 0.0
    %755 = vmatpush1.msra.mxu0 0.0
    %756 = vmatprep.subr.mxu0 0.0
    %757 = vmatpush1.msra.mxu0 0.0
    %758 = vmatprep.subr.mxu0 0.0
    %759 = vmatpush1.msra.mxu0 0.0
    %760 = vmatprep.subr.mxu0 0.0
    %761 = vmatpush1.msra.mxu0 0.0
    %762 = vmatprep.subr.mxu0 0.0
    %763 = vmatpush1.msra.mxu0 0.0
    %764 = vmatprep.subr.mxu0 0.0
    %765 = vmatpush1.msra.mxu0 0.0
    %766 = vmatprep.subr.mxu0 0.0
    %767 = vmatpush1.msra.mxu0 0.0
    %768 = vmatprep.subr.mxu0 0.0
    %769 = vmatpush1.msra.mxu0 0.0
    %770 = vmatprep.subr.mxu0 0.0
    %771 = vmatpush1.msra.mxu0 0.0
    %772 = vmatprep.subr.mxu0 0.0
    %773 = vmatpush1.msra.mxu0 0.0
    %774 = vmatprep.subr.mxu0 0.0
    %775 = vmatpush1.msra.mxu0 0.0
    %776 = vmatprep.subr.mxu0 0.0
    %777 = vmatpush1.msra.mxu0 0.0
    %778 = vmatprep.subr.mxu0 0.0
    %779 = vmatpush1.msra.mxu0 0.0
    %780 = vmatprep.subr.mxu0 0.0
    %781 = vmatpush1.msra.mxu0 0.0
    %782 = vmatprep.subr.mxu0 0.0
    %783 = vmatpush1.msra.mxu0 0.0
    %784 = vmatprep.subr.mxu0 0.0
    %785 = vmatpush1.msra.mxu0 0.0
    %786 = vmatprep.subr.mxu0 0.0
    %787 = vmatpush1.msra.mxu0 0.0
    %788 = vmatprep.subr.mxu0 0.0
    %789 = vmatpush1.msra.mxu0 0.0
    %790 = vmatprep.subr.mxu0 0.0
    %791 = vmatpush1.msra.mxu0 0.0
    %792 = vmatprep.subr.mxu0 0.0
    %793 = vmatpush1.msra.mxu0 0.0
    %794 = vmatprep.subr.mxu0 0.0
    %795 = vmatpush1.msra.mxu0 0.0
    %796 = vmatprep.mubr.f32.mxu0 0.0
    %797 = vmatmul.mubr.f32.gmra.mrb[0].mxu0 %v717
    %v798 = vpop.f32.mrb[0].mxu0
    %v799 = vadd.f32 0.0, %v798
    %v800 = vpop.f32.mrb[0].mxu0
    %801 = vmatprep.mubr.f32.mxu0 0.0
    %802 = vmatmul.mubr.f32.gmra.mrb[0].mxu0 %v720
    %v803 = vpop.f32.mrb[0].mxu0
    %v804 = vadd.f32 0.0, %v803
    %v805 = vpop.f32.mrb[0].mxu0
    %806 = vmatprep.mubr.f32.mxu0 0.0
    %807 = vmatmul.mubr.f32.gmra.mrb[0].mxu0 %v723
    %v808 = vpop.f32.mrb[0].mxu0
    %v809 = vadd.f32 0.0, %v808
    %v810 = vpop.f32.mrb[0].mxu0
    %811 = vmatprep.mubr.f32.mxu0 0.0
    %812 = vmatmul.mubr.f32.gmra.mrb[0].mxu0 %v726
    %v813 = vpop.f32.mrb[0].mxu0
    %v814 = vadd.f32 0.0, %v813
    %v815 = vpop.f32.mrb[0].mxu0
    %816 = vdwg.mxu0
    %821 = vrot.lane.b32.xlu0 %v225, 96
    %v822 = vpop.permute.xlu0 %821
    %823 = vrot.lane.b32.xlu0 %v230, 96
    %v824 = vpop.permute.xlu0 %823
    %825 = vrot.lane.b32.xlu0 %v235, 96
    %v826 = vpop.permute.xlu0 %825
    %827 = vrot.lane.b32.xlu0 %v240, 96
    %v828 = vpop.permute.xlu0 %827
    %v833 = vmul.f32 %v799, %v822
    %v834 = vmul.f32 %v804, %v824
    %v835 = vmul.f32 %v809, %v826
    %v836 = vmul.f32 %v814, %v828
    %v837 = vsel %vm98, %v833, 0.0
    %v838 = vsel %vm98, %v834, 0.0
    %v839 = vadd.f32 %v837, %v838
    %v840 = vrot.slane %v839, 4
    %v841 = vadd.f32 %v839, %v840
    %v842 = vrot.slane %v841, 2
    %v843 = vadd.f32 %v841, %v842
    %v844 = vrot.slane %v843, 1
    %v845 = vadd.f32 %v843, %v844
    %v846 = vsel %vm98, %v835, 0.0
    %v847 = vsel %vm98, %v836, 0.0
    %v848 = vadd.f32 %v846, %v847
    %v849 = vrot.slane %v848, 4
    %v850 = vadd.f32 %v848, %v849
    %v851 = vrot.slane %v850, 2
    %v852 = vadd.f32 %v850, %v851
    %v853 = vrot.slane %v852, 1
    %v854 = vadd.f32 %v852, %v853
    %v856 = vsel %vm618, %v714, 0
    %858 = vmatprep.subr.mxu0 0.0
    %859 = vmatpush1.msra.mxu0 %v730
    %860 = vmatprep.subr.mxu0 0.0
    %861 = vmatpush1.msra.mxu0 0.0
    %862 = vmatprep.subr.mxu0 0.0
    %863 = vmatpush1.msra.mxu0 0.0
    %864 = vmatprep.subr.mxu0 0.0
    %865 = vmatpush1.msra.mxu0 0.0
    %866 = vmatprep.subr.mxu0 0.0
    %867 = vmatpush1.msra.mxu0 0.0
    %868 = vmatprep.subr.mxu0 0.0
    %869 = vmatpush1.msra.mxu0 0.0
    %870 = vmatprep.subr.mxu0 0.0
    %871 = vmatpush1.msra.mxu0 0.0
    %872 = vmatprep.subr.mxu0 0.0
    %873 = vmatpush1.msra.mxu0 0.0
    %874 = vmatprep.subr.mxu0 0.0
    %875 = vmatpush1.msra.mxu0 0.0
    %876 = vmatprep.subr.mxu0 0.0
    %877 = vmatpush1.msra.mxu0 0.0
    %878 = vmatprep.subr.mxu0 0.0
    %879 = vmatpush1.msra.mxu0 0.0
    %880 = vmatprep.subr.mxu0 0.0
    %881 = vmatpush1.msra.mxu0 0.0
    %882 = vmatprep.subr.mxu0 0.0
    %883 = vmatpush1.msra.mxu0 0.0
    %884 = vmatprep.subr.mxu0 0.0
    %885 = vmatpush1.msra.mxu0 0.0
    %886 = vmatprep.subr.mxu0 0.0
    %887 = vmatpush1.msra.mxu0 0.0
    %888 = vmatprep.subr.mxu0 0.0
    %889 = vmatpush1.msra.mxu0 0.0
    %890 = vmatprep.subr.mxu0 0.0
    %891 = vmatpush1.msra.mxu0 0.0
    %892 = vmatprep.subr.mxu0 0.0
    %893 = vmatpush1.msra.mxu0 0.0
    %894 = vmatprep.subr.mxu0 0.0
    %895 = vmatpush1.msra.mxu0 0.0
    %896 = vmatprep.subr.mxu0 0.0
    %897 = vmatpush1.msra.mxu0 0.0
    %898 = vmatprep.subr.mxu0 0.0
    %899 = vmatpush1.msra.mxu0 0.0
    %900 = vmatprep.subr.mxu0 0.0
    %901 = vmatpush1.msra.mxu0 0.0
    %902 = vmatprep.subr.mxu0 0.0
    %903 = vmatpush1.msra.mxu0 0.0
    %904 = vmatprep.subr.mxu0 0.0
    %905 = vmatpush1.msra.mxu0 0.0
    %906 = vmatprep.subr.mxu0 0.0
    %907 = vmatpush1.msra.mxu0 0.0
    %908 = vmatprep.subr.mxu0 0.0
    %909 = vmatpush1.msra.mxu0 0.0
    %910 = vmatprep.subr.mxu0 0.0
    %911 = vmatpush1.msra.mxu0 0.0
    %912 = vmatprep.subr.mxu0 0.0
    %913 = vmatpush1.msra.mxu0 0.0
    %914 = vmatprep.subr.mxu0 0.0
    %915 = vmatpush1.msra.mxu0 0.0
    %916 = vmatprep.subr.mxu0 0.0
    %917 = vmatpush1.msra.mxu0 0.0
    %918 = vmatprep.subr.mxu0 0.0
    %919 = vmatpush1.msra.mxu0 0.0
    %920 = vmatprep.subr.mxu0 0.0
    %921 = vmatpush1.msra.mxu0 0.0
    %922 = vmatprep.mubr.f32.mxu0 0.0
    %923 = vmatmul.mubr.f32.gmra.mrb[0].mxu0 %v856
    %v924 = vpop.f32.mrb[0].mxu0
    %v925 = vadd.f32 0.0, %v924
    %v926 = vpop.f32.mrb[0].mxu0
    %927 = vdwg.mxu0
    %929 = vrot.lane.b32.xlu0 %v398, 96
    %v930 = vpop.permute.xlu0 %929
    %v932 = vmul.f32 %v925, %v930
    %v934 = vrot.slane %v932, 1
    %v937 = vadd.f32 %v845, %v932
    %v938 = vadd.f32 %v854, %v934
    %v939 = vld [vmem:[#allocation8] sm:$0xff]
    %v940 = vld [vmem:[#allocation8 + $0x8] sm:$0xff]
    %v941 = vld [vmem:[#allocation8 + $0x10] sm:$0xff]
    %v942 = vld [vmem:[#allocation8 + $0x18] sm:$0xff]
    %v943 = vld [vmem:[%s8] sm:$0x1]
    %v945 = vlaneseq
    %v946 = vshrl.u32 %v945, 7
    %v947 = vsub.s32 0, %v946
    %v948 = vrot.slane %v943, %v947
    %v952 = vrot.slane %v938, 7
    %v953 = vsel %vm257, %v952, %v937
    %v954 = vsel %vm98, %v953, 0
    %956 = vmatprep.subr.mxu0 0.0
    %957 = vmatpush1.msra.mxu0 %v939
    %958 = vmatprep.subr.mxu0 0.0
    %959 = vmatpush1.msra.mxu0 %v940
    %960 = vmatprep.subr.mxu0 0.0
    %961 = vmatpush1.msra.mxu0 %v941
    %962 = vmatprep.subr.mxu0 0.0
    %963 = vmatpush1.msra.mxu0 %v942
    %964 = vmatprep.subr.mxu0 0.0
    %965 = vmatpush1.msra.mxu0 0.0
    %966 = vmatprep.subr.mxu0 0.0
    %967 = vmatpush1.msra.mxu0 0.0
    %968 = vmatprep.subr.mxu0 0.0
    %969 = vmatpush1.msra.mxu0 0.0
    %970 = vmatprep.subr.mxu0 0.0
    %971 = vmatpush1.msra.mxu0 0.0
    %972 = vmatprep.subr.mxu0 0.0
    %973 = vmatpush1.msra.mxu0 0.0
    %974 = vmatprep.subr.mxu0 0.0
    %975 = vmatpush1.msra.mxu0 0.0
    %976 = vmatprep.subr.mxu0 0.0
    %977 = vmatpush1.msra.mxu0 0.0
    %978 = vmatprep.subr.mxu0 0.0
    %979 = vmatpush1.msra.mxu0 0.0
    %980 = vmatprep.subr.mxu0 0.0
    %981 = vmatpush1.msra.mxu0 0.0
    %982 = vmatprep.subr.mxu0 0.0
    %983 = vmatpush1.msra.mxu0 0.0
    %984 = vmatprep.subr.mxu0 0.0
    %985 = vmatpush1.msra.mxu0 0.0
    %986 = vmatprep.subr.mxu0 0.0
    %987 = vmatpush1.msra.mxu0 0.0
    %988 = vmatprep.subr.mxu0 0.0
    %989 = vmatpush1.msra.mxu0 0.0
    %990 = vmatprep.subr.mxu0 0.0
    %991 = vmatpush1.msra.mxu0 0.0
    %992 = vmatprep.subr.mxu0 0.0
    %993 = vmatpush1.msra.mxu0 0.0
    %994 = vmatprep.subr.mxu0 0.0
    %995 = vmatpush1.msra.mxu0 0.0
    %996 = vmatprep.subr.mxu0 0.0
    %997 = vmatpush1.msra.mxu0 0.0
    %998 = vmatprep.subr.mxu0 0.0
    %999 = vmatpush1.msra.mxu0 0.0
    %1000 = vmatprep.subr.mxu0 0.0
    %1001 = vmatpush1.msra.mxu0 0.0
    %1002 = vmatprep.subr.mxu0 0.0
    %1003 = vmatpush1.msra.mxu0 0.0
    %1004 = vmatprep.subr.mxu0 0.0
    %1005 = vmatpush1.msra.mxu0 0.0
    %1006 = vmatprep.subr.mxu0 0.0
    %1007 = vmatpush1.msra.mxu0 0.0
    %1008 = vmatprep.subr.mxu0 0.0
    %1009 = vmatpush1.msra.mxu0 0.0
    %1010 = vmatprep.subr.mxu0 0.0
    %1011 = vmatpush1.msra.mxu0 0.0
    %1012 = vmatprep.subr.mxu0 0.0
    %1013 = vmatpush1.msra.mxu0 0.0
    %1014 = vmatprep.subr.mxu0 0.0
    %1015 = vmatpush1.msra.mxu0 0.0
    %1016 = vmatprep.subr.mxu0 0.0
    %1017 = vmatpush1.msra.mxu0 0.0
    %1018 = vmatprep.subr.mxu0 0.0
    %1019 = vmatpush1.msra.mxu0 0.0
    %1020 = vmatprep.mubr.f32.mxu0 0.0
    %1021 = vmatmul.mubr.f32.gmra.mrb[0].mxu0 %v954
    %v1022 = vpop.f32.mrb[0].mxu0
    %v1023 = vadd.f32 %v948, %v1022
    %v1024 = vpop.f32.mrb[0].mxu0
    %1025 = vdwg.mxu0
    %vm1026 = vcmask 254976
    %1027 = vst.msk [vmem:[#allocation10] sm:$0x3] %vm1026, %v1023
    // Predicated region
    $region62: #{tpu_custom_call.1} parent=1 // pred_check
      _
    $region63: #{tpu_custom_call.1} parent=1 // pred_check_branch
      %1029 = sbr.rel (0) target = $region65
    $region64: #{tpu_custom_call.1} parent=1 // pred_region
      %s1031 = ssub.s32 32, 32
      %1032 = vsyncadd [#allocation4], %s1031
      %s1034 = sshll.u32 [#allocation10], 4
      %s1035 = int_to_ptr.vmem [resolvable:$true] %s1034
      %1037 = dma.vmem_to_hbm [thread:$0]  %s1035, 32, %s11, [#allocation4]
    $region65: #{tpu_custom_call.1} parent=1 // pred_fallthru
      _
    // Predicated region
    $region66: #{tpu_custom_call.1} parent=1 // pred_check
      _
    $region67: #{tpu_custom_call.1} parent=1 // pred_check_branch
      %1039 = sbr.rel (0) target = $region69
    $region68: #{tpu_custom_call.1} parent=1 // pred_region
      %1040 = dma.done [#allocation4], 32
    $region69: #{tpu_custom_call.1} parent=1 // pred_fallthru
      _
    %1041 = vsyncpa [#allocation3], 1
    %1042 = vsyncpa [#allocation6], 1
    %1043 = vsyncpa [#allocation9], 1
    %1044 = vsyncpa [#allocation4], 1

</llo_original>
